<compile_context>
chip_gen: v6e
topology: v6e:2x2x1
jax: 0.10.0
libtpu: 0.0.40
codegen_flags: <defaults>
</compile_context>

<pallas_src>
import functools

import jax
import jax.numpy as jnp
from jax.experimental import pallas as pl
from jax.experimental.pallas import tpu as pltpu

_EPS = 1e-12  # F.normalize default eps (clamp: scale = 1 / max(norm, eps))


def _round_up(x, m):
    return ((x + m - 1) // m) * m


def _normed_linear_kernel(x_ref, w_ref, o_ref, acc_ref, xsq_ref, wsq_ref):
    """Grid = (N/TM, K/TN, C/TK); C (k) is the innermost reduction axis."""
    kk = pl.program_id(2)

    @pl.when(kk == 0)
    def _init():
        acc_ref[...] = jnp.zeros_like(acc_ref)
        xsq_ref[...] = jnp.zeros_like(xsq_ref)
        wsq_ref[...] = jnp.zeros_like(wsq_ref)

    x = x_ref[...]                                        # (TM, TK) native dtype
    w = w_ref[...]                                        # (TK, TN) native dtype

    # MXU matmul on native operands, f32 accumulation.
    acc_ref[...] += jnp.dot(x, w, preferred_element_type=jnp.float32)

    # Partial sum-of-squares for the deferred normalization (f32 accumulation).
    xf = x.astype(jnp.float32)
    wf = w.astype(jnp.float32)
    xsq_ref[...] += jnp.sum(xf * xf, axis=1, keepdims=True)   # (TM, 1)
    wsq_ref[...] += jnp.sum(wf * wf, axis=0, keepdims=True)   # (1, TN)

    @pl.when(kk == pl.num_programs(2) - 1)
    def _epilogue():
        # 1/max(norm, eps)  ==  rsqrt(max(sum_sq, eps^2)); EUP rsqrt, cheap.
        inv_x = jax.lax.rsqrt(jnp.maximum(xsq_ref[...], _EPS * _EPS))  # (TM, 1)
        inv_w = jax.lax.rsqrt(jnp.maximum(wsq_ref[...], _EPS * _EPS))  # (1, TN)
        o_ref[...] = (acc_ref[...] * inv_x * inv_w).astype(o_ref.dtype)


@functools.partial(jax.jit, static_argnames=("tm", "tn", "tk"))
def normed_linear(x, weight, *, tm=256, tn=256, tk=512):
    """out = normalize(x, dim=1) @ normalize(weight, dim=0).

    Default tiles (256/256/512) keep the double-buffered VMEM footprint at a
    few MiB, well inside the scoped-VMEM default on v5e/v6e/v7x, while TN/TK
    stay multiples of 256 to fill the 2x256^2 MXU on v6e/v7x.
    """
    n, c = x.shape
    c2, k = weight.shape
    assert c == c2, "in_features mismatch"
    assert tm % 8 == 0 and tn % 128 == 0 and tk % 128 == 0, "bad tile sizes"

    # Shrink tiles to the (aligned) problem size, then pad so every dim is
    # tile-divisible.  Lane dims (TK for x, TN for w/out) stay >=128 so all
    # stores are unmasked / lane-dense.
    tm_e = min(tm, _round_up(n, 8))
    tk_e = min(tk, _round_up(c, 128))
    tn_e = min(tn, _round_up(k, 128))
    n_pad = _round_up(n, tm_e)
    c_pad = _round_up(c, tk_e)
    k_pad = _round_up(k, tn_e)

    x_p = x if (n_pad == n and c_pad == c) else jnp.pad(
        x, ((0, n_pad - n), (0, c_pad - c)))
    w_p = weight if (c_pad == c and k_pad == k) else jnp.pad(
        weight, ((0, c_pad - c), (0, k_pad - k)))

    grid = (n_pad // tm_e, k_pad // tn_e, c_pad // tk_e)

    out = pl.pallas_call(
        _normed_linear_kernel,
        out_shape=jax.ShapeDtypeStruct((n_pad, k_pad), x.dtype),
        grid_spec=pltpu.PrefetchScalarGridSpec(
            num_scalar_prefetch=0,
            grid=grid,
            in_specs=[
                pl.BlockSpec((tm_e, tk_e), lambda i, j, kk: (i, kk)),
                pl.BlockSpec((tk_e, tn_e), lambda i, j, kk: (kk, j)),
            ],
            out_specs=pl.BlockSpec((tm_e, tn_e), lambda i, j, kk: (i, j)),
            scratch_shapes=[
                pltpu.VMEM((tm_e, tn_e), jnp.float32),  # matmul accumulator
                pltpu.VMEM((tm_e, 1), jnp.float32),     # row sum-of-squares
                pltpu.VMEM((1, tn_e), jnp.float32),     # col sum-of-squares
            ],
        ),
        compiler_params=pltpu.CompilerParams(
            dimension_semantics=("parallel", "parallel", "arbitrary")),
        cost_estimate=pl.CostEstimate(
            flops=2 * n_pad * c_pad * k_pad,
            transcendentals=n_pad + k_pad,
            bytes_accessed=(n_pad * c_pad + c_pad * k_pad + n_pad * k_pad)
            * x.dtype.itemsize,
        ),
    )(x_p, w_p)

    if n_pad != n or k_pad != k:
        out = out[:n, :k]
    return out


def init_normed_linear_weight(key, in_features, out_features):
    """Deterministic emulation of:
         weight.uniform_(-1, 1).renorm_(2, 1, 1e-5).mul_(1e5)
    (each column rescaled so its L2 norm is at most 1e-5, then * 1e5)."""
    w = jax.random.uniform(key, (in_features, out_features),
                           dtype=jnp.float32, minval=-1.0, maxval=1.0)
    col_norm = jnp.sqrt(jnp.sum(w * w, axis=0, keepdims=True))
    scale = jnp.minimum(1.0, 1e-5 / jnp.maximum(col_norm, 1e-20))
    return w * scale * 1e5


def reference_normed_linear(x, weight):
    xn = x / jnp.maximum(
        jnp.sqrt(jnp.sum(x * x, axis=1, keepdims=True)), _EPS)
    wn = weight / jnp.maximum(
        jnp.sqrt(jnp.sum(weight * weight, axis=0, keepdims=True)), _EPS)
    return xn @ wn


if __name__ == "__main__":
    key = jax.random.PRNGKey(0)
    k_x, k_w, k_x2, k_w2 = jax.random.split(key, 4)

    # Small shapes consistent with the module (a plain linear head).
    batch, in_features, out_features = 8, 32, 16
    x = jax.random.normal(k_x, (batch, in_features), dtype=jnp.float32)
    weight = init_normed_linear_weight(k_w, in_features, out_features)

    out = jax.block_until_ready(normed_linear(x, weight))
    ref = reference_normed_linear(x, weight)
    assert out.shape == (batch, out_features)
    assert jnp.allclose(out, ref, atol=1e-5, rtol=1e-5), "mismatch vs reference"

    # Second check with small custom tiles to exercise the multi-step
    # (i, j, k) grid, accumulator init/epilogue, and padding/slicing paths.
    n2, c2, k2 = 16, 384, 272
    x2 = jax.random.normal(k_x2, (n2, c2), dtype=jnp.float32)
    w2 = init_normed_linear_weight(k_w2, c2, k2)
    out2 = jax.block_until_ready(normed_linear(x2, w2, tm=8, tn=128, tk=128))
    ref2 = reference_normed_linear(x2, w2)
    assert out2.shape == (n2, k2)
    assert jnp.allclose(out2, ref2, atol=1e-5, rtol=1e-5), "tiled mismatch"

    print("KERNEL_OK")
</pallas_src>

<mosaic_0001>
module attributes {stable_mosaic.version = 11 : i64} {
  func.func @_normed_linear_kernel(%arg0: i32, %arg1: i32, %arg2: i32, %arg3: memref<8x128xf32, #tpu.memory_space<vmem>>, %arg4: memref<128x128xf32, #tpu.memory_space<vmem>>, %arg5: memref<8x128xf32, #tpu.memory_space<vmem>>, %arg6: memref<8x128xf32, #tpu.memory_space<vmem>>, %arg7: memref<8x1xf32, #tpu.memory_space<vmem>>, %arg8: memref<1x128xf32, #tpu.memory_space<vmem>>) attributes {dimension_semantics = [#tpu.dimension_semantics<parallel>, #tpu.dimension_semantics<parallel>, #tpu.dimension_semantics<arbitrary>], iteration_bounds = array<i64: 1, 1, 1>, scalar_prefetch = 0 : i64, scratch_operands = 3 : i64, tpu.core_type = #tpu.core_type<tc>, window_params = [{transform_indices = @transform_0, window_bounds = array<i64: 8, 128>}, {transform_indices = @transform_1, window_bounds = array<i64: 128, 128>}, {transform_indices = @transform_2, window_bounds = array<i64: 8, 128>}]} {
    %c0_i32 = arith.constant 0 : i32
    %0 = arith.cmpi eq, %arg2, %c0_i32 : i32
    %1 = arith.extui %0 : i1 to i32
    %c0_i32_0 = arith.constant 0 : i32
    %2 = arith.cmpi ne, %1, %c0_i32_0 : i32
    scf.if %2 {
      %cst_20 = arith.constant 0.000000e+00 : f32
      %24 = vector.broadcast %cst_20 : f32 to vector<8x128xf32>
      %c0_21 = arith.constant 0 : index
      %c0_22 = arith.constant 0 : index
      %25 = vector.load %arg6[%c0_21, %c0_22] : memref<8x128xf32, #tpu.memory_space<vmem>>, vector<8x128xf32>
      tpu.vector_store %arg6[%c0_21, %c0_22], %24 {strides = array<i32>} : memref<8x128xf32, #tpu.memory_space<vmem>>, vector<8x128xf32>,
      %cst_23 = arith.constant 0.000000e+00 : f32
      %26 = vector.broadcast %cst_23 : f32 to vector<8x1xf32>
      %c0_24 = arith.constant 0 : index
      %c0_25 = arith.constant 0 : index
      %27 = vector.load %arg7[%c0_24, %c0_25] : memref<8x1xf32, #tpu.memory_space<vmem>>, vector<8x1xf32>
      tpu.vector_store %arg7[%c0_24, %c0_25], %26 {strides = array<i32>} : memref<8x1xf32, #tpu.memory_space<vmem>>, vector<8x1xf32>,
      %cst_26 = arith.constant 0.000000e+00 : f32
      %28 = vector.broadcast %cst_26 : f32 to vector<1x128xf32>
      %c0_27 = arith.constant 0 : index
      %c0_28 = arith.constant 0 : index
      %29 = vector.load %arg8[%c0_27, %c0_28] : memref<1x128xf32, #tpu.memory_space<vmem>>, vector<1x128xf32>
      tpu.vector_store %arg8[%c0_27, %c0_28], %28 {strides = array<i32>} : memref<1x128xf32, #tpu.memory_space<vmem>>, vector<1x128xf32>,
    } else {
    }
    %c0 = arith.constant 0 : index
    %c0_1 = arith.constant 0 : index
    %3 = vector.load %arg3[%c0, %c0_1] : memref<8x128xf32, #tpu.memory_space<vmem>>, vector<8x128xf32>
    %c0_2 = arith.constant 0 : index
    %c0_3 = arith.constant 0 : index
    %4 = vector.load %arg4[%c0_2, %c0_3] : memref<128x128xf32, #tpu.memory_space<vmem>>, vector<128x128xf32>
    %c0_4 = arith.constant 0 : index
    %c0_5 = arith.constant 0 : index
    %5 = vector.load %arg6[%c0_4, %c0_5] : memref<8x128xf32, #tpu.memory_space<vmem>>, vector<8x128xf32>
    %cst = arith.constant dense<0.000000e+00> : vector<8x128xf32>
    %6 = tpu.matmul %3, %4, %cst {dimension_numbers = #tpu.dot_dimension_numbers<[1], [0], [0], [1], [0, 0, 1, 1], [], []>} : vector<8x128xf32>, vector<128x128xf32>, vector<8x128xf32> -> vector<8x128xf32>
    %7 = arith.addf %5, %6 : vector<8x128xf32>
    %c0_6 = arith.constant 0 : index
    %c0_7 = arith.constant 0 : index
    %8 = vector.load %arg6[%c0_6, %c0_7] : memref<8x128xf32, #tpu.memory_space<vmem>>, vector<8x128xf32>
    tpu.vector_store %arg6[%c0_6, %c0_7], %7 {strides = array<i32>} : memref<8x128xf32, #tpu.memory_space<vmem>>, vector<8x128xf32>,
    %c0_8 = arith.constant 0 : index
    %c0_9 = arith.constant 0 : index
    %9 = vector.load %arg7[%c0_8, %c0_9] : memref<8x1xf32, #tpu.memory_space<vmem>>, vector<8x1xf32>
    %10 = arith.mulf %3, %3 : vector<8x128xf32>
    %cst_10 = arith.constant dense<0.000000e+00> : vector<8xf32>
    %11 = vector.multi_reduction <add>, %10, %cst_10 [1] : vector<8x128xf32> to vector<8xf32>
    %12 = vector.shape_cast %11 : vector<8xf32> to vector<8x1xf32>
    %13 = arith.addf %9, %12 : vector<8x1xf32>
    %c0_11 = arith.constant 0 : index
    %c0_12 = arith.constant 0 : index
    %14 = vector.load %arg7[%c0_11, %c0_12] : memref<8x1xf32, #tpu.memory_space<vmem>>, vector<8x1xf32>
    tpu.vector_store %arg7[%c0_11, %c0_12], %13 {strides = array<i32>} : memref<8x1xf32, #tpu.memory_space<vmem>>, vector<8x1xf32>,
    %c0_13 = arith.constant 0 : index
    %c0_14 = arith.constant 0 : index
    %15 = vector.load %arg8[%c0_13, %c0_14] : memref<1x128xf32, #tpu.memory_space<vmem>>, vector<1x128xf32>
    %16 = arith.mulf %4, %4 : vector<128x128xf32>
    %cst_15 = arith.constant dense<0.000000e+00> : vector<128xf32>
    %17 = vector.multi_reduction <add>, %16, %cst_15 [0] : vector<128x128xf32> to vector<128xf32>
    %18 = vector.shape_cast %17 : vector<128xf32> to vector<1x128xf32>
    %19 = arith.addf %15, %18 : vector<1x128xf32>
    %c0_16 = arith.constant 0 : index
    %c0_17 = arith.constant 0 : index
    %20 = vector.load %arg8[%c0_16, %c0_17] : memref<1x128xf32, #tpu.memory_space<vmem>>, vector<1x128xf32>
    tpu.vector_store %arg8[%c0_16, %c0_17], %19 {strides = array<i32>} : memref<1x128xf32, #tpu.memory_space<vmem>>, vector<1x128xf32>,
    %c0_i32_18 = arith.constant 0 : i32
    %21 = arith.cmpi eq, %arg2, %c0_i32_18 : i32
    %22 = arith.extui %21 : i1 to i32
    %c0_i32_19 = arith.constant 0 : i32
    %23 = arith.cmpi ne, %22, %c0_i32_19 : i32
    scf.if %23 {
      %c0_20 = arith.constant 0 : index
      %c0_21 = arith.constant 0 : index
      %24 = vector.load %arg7[%c0_20, %c0_21] : memref<8x1xf32, #tpu.memory_space<vmem>>, vector<8x1xf32>
      %cst_22 = arith.constant 1.000000e-24 : f32
      %25 = vector.broadcast %cst_22 : f32 to vector<8x1xf32>
      %26 = arith.maximumf %24, %25 : vector<8x1xf32>
      %27 = math.rsqrt %26 : vector<8x1xf32>
      %c0_23 = arith.constant 0 : index
      %c0_24 = arith.constant 0 : index
      %28 = vector.load %arg8[%c0_23, %c0_24] : memref<1x128xf32, #tpu.memory_space<vmem>>, vector<1x128xf32>
      %cst_25 = arith.constant 1.000000e-24 : f32
      %29 = vector.broadcast %cst_25 : f32 to vector<1x128xf32>
      %30 = arith.maximumf %28, %29 : vector<1x128xf32>
      %31 = math.rsqrt %30 : vector<1x128xf32>
      %c0_26 = arith.constant 0 : index
      %c0_27 = arith.constant 0 : index
      %32 = vector.load %arg6[%c0_26, %c0_27] : memref<8x128xf32, #tpu.memory_space<vmem>>, vector<8x128xf32>
      %33 = vector.broadcast %27 : vector<8x1xf32> to vector<8x128xf32>
      %34 = arith.mulf %32, %33 : vector<8x128xf32>
      %35 = vector.broadcast %31 : vector<1x128xf32> to vector<8x128xf32>
      %36 = arith.mulf %34, %35 : vector<8x128xf32>
      %c0_28 = arith.constant 0 : index
      %c0_29 = arith.constant 0 : index
      %37 = vector.load %arg5[%c0_28, %c0_29] : memref<8x128xf32, #tpu.memory_space<vmem>>, vector<8x128xf32>
      tpu.vector_store %arg5[%c0_28, %c0_29], %36 {strides = array<i32>} : memref<8x128xf32, #tpu.memory_space<vmem>>, vector<8x128xf32>,
    } else {
    }
    return
  }
  func.func @transform_0(%arg0: i32, %arg1: i32, %arg2: i32) -> (i32, i32) {
    %c0_i32 = arith.constant 0 : i32
    return %arg0, %arg2 : i32, i32
  }
  func.func @transform_1(%arg0: i32, %arg1: i32, %arg2: i32) -> (i32, i32) {
    %c0_i32 = arith.constant 0 : i32
    return %arg2, %arg1 : i32, i32
  }
  func.func @transform_2(%arg0: i32, %arg1: i32, %arg2: i32) -> (i32, i32) {
    %c0_i32 = arith.constant 0 : i32
    return %arg0, %arg1 : i32, i32
  }
}

</mosaic_0001>

<llo_original>
// kernel: normed_linear.1
$region0: #{normed_linear.1}
  #allocation0 [shape = 'u32[]', space=smem, size = 0x4, offset = 0x4, fixed_abs, tag = 'smem constant byte address 0x4 - core index']
  #allocation1 [shape = 'u32[144,128]{1,0:T(1,128)}', space=vmem, size = 0x12000, scoped, tag = 'internal scratch']
  #allocation2 [shape = 'f32[8,128]{1,0:T(8,128)}', space=vmem, size = 0x1000, scoped, tag = 'scratch operand']
  #allocation3 [shape = 'f32[8,1]{1,0:T(8,128)}', space=vmem, size = 0x1000, scoped, tag = 'scratch operand']
  #allocation4 [shape = 'f32[1,128]{1,0:T(1,128)}', space=vmem, size = 0x200, scoped, tag = 'scratch operand']
  %s0 = inlined_call_operand.vmem [shape: f32[8,128], index: 0, kind: input, shape index: {}]
  %s1 = inlined_call_operand.vmem [shape: f32[128,128], index: 1, kind: input, shape index: {}]
  %s2 = inlined_call_operand.hbm [shape: f32[8,128], index: 2, kind: output, shape index: {}]
  %s3 = sld [smem:[#allocation0]]
  $region26: #{normed_linear.1} parent=0
    _
  %s5 = ssub.s32 1, %s3
  %s6 = scalar_select 0, %s5, %s3
  $region1: #{normed_linear.1} parent=0
    #allocation5 [shape = 'u8[4096]{0}', space=vmem, size = 0x1000, scoped, tag = 'output window, operand 0, single buffered']
    #allocation6 [shape = 's32[1]{0}', space=sflag, size = 0x4, scoped, tag = 'scoped memory for normed_linear.1']
    %7 = vsyncpa [#allocation6], 0
    // Predicated region
    $region2: #{normed_linear.1} parent=1 // pred_check
      _
    $region3: #{normed_linear.1} parent=1 // pred_check_branch
      %9 = sbr.rel (0) target = $region5
    $region4: #{normed_linear.1} parent=1 // pred_region
      _
    $region5: #{normed_linear.1} parent=1 // pred_fallthru
      _
    // Predicated region
    $region6: #{normed_linear.1} parent=1 // pred_check
      _
    $region7: #{normed_linear.1} parent=1 // pred_check_branch
      %11 = sbr.rel (0) target = $region9
    $region8: #{normed_linear.1} parent=1 // pred_region
      _
    $region9: #{normed_linear.1} parent=1 // pred_fallthru
      _
    %p12 = scmp.eq.s32.totalorder 0, 0
    // Predicated region
    $region10: #{normed_linear.1} parent=1 // pred_check
      %p13 = pneg %p12
    $region11: #{normed_linear.1} parent=1 // pred_check_branch
      %15 = sbr.rel (%p13) target = $region13
    $region12: #{normed_linear.1} parent=1 // pred_region
      %16 = vst [vmem:[#allocation2] sm:$0xff] 0.0
      %vm17 = vcmask 7168
      %18 = vst.msk [vmem:[#allocation3] sm:$0xff] %vm17, 0.0
      %19 = vst [vmem:[#allocation4] sm:$0x1] 0.0
    $region13: #{normed_linear.1} parent=1 // pred_fallthru
      _
    %v20 = vld [vmem:[%s0] sm:$0xff]
    %v21 = vld [vmem:[%s1] sm:$0xff]
    %v22 = vld [vmem:[%s1 + $0x8] sm:$0xff]
    %v23 = vld [vmem:[%s1 + $0x10] sm:$0xff]
    %v24 = vld [vmem:[%s1 + $0x18] sm:$0xff]
    %v25 = vld [vmem:[%s1 + $0x20] sm:$0xff]
    %v26 = vld [vmem:[%s1 + $0x28] sm:$0xff]
    %v27 = vld [vmem:[%s1 + $0x30] sm:$0xff]
    %v28 = vld [vmem:[%s1 + $0x38] sm:$0xff]
    %v29 = vld [vmem:[%s1 + $0x40] sm:$0xff]
    %v30 = vld [vmem:[%s1 + $0x48] sm:$0xff]
    %v31 = vld [vmem:[%s1 + $0x50] sm:$0xff]
    %v32 = vld [vmem:[%s1 + $0x58] sm:$0xff]
    %v33 = vld [vmem:[%s1 + $0x60] sm:$0xff]
    %v34 = vld [vmem:[%s1 + $0x68] sm:$0xff]
    %v35 = vld [vmem:[%s1 + $0x70] sm:$0xff]
    %v36 = vld [vmem:[%s1 + $0x78] sm:$0xff]
    %v37 = vld [vmem:[#allocation2] sm:$0xff]
    %38 = vmatprep.subr.mxu0 0.0
    %39 = vmatpush1.msra.mxu0 %v36
    %40 = vmatprep.subr.mxu0 0.0
    %41 = vmatpush1.msra.mxu0 %v35
    %42 = vmatprep.subr.mxu0 0.0
    %43 = vmatpush1.msra.mxu0 %v34
    %44 = vmatprep.subr.mxu0 0.0
    %45 = vmatpush1.msra.mxu0 %v33
    %46 = vmatprep.subr.mxu0 0.0
    %47 = vmatpush1.msra.mxu0 %v32
    %48 = vmatprep.subr.mxu0 0.0
    %49 = vmatpush1.msra.mxu0 %v31
    %50 = vmatprep.subr.mxu0 0.0
    %51 = vmatpush1.msra.mxu0 %v30
    %52 = vmatprep.subr.mxu0 0.0
    %53 = vmatpush1.msra.mxu0 %v29
    %54 = vmatprep.subr.mxu0 0.0
    %55 = vmatpush1.msra.mxu0 %v28
    %56 = vmatprep.subr.mxu0 0.0
    %57 = vmatpush1.msra.mxu0 %v27
    %58 = vmatprep.subr.mxu0 0.0
    %59 = vmatpush1.msra.mxu0 %v26
    %60 = vmatprep.subr.mxu0 0.0
    %61 = vmatpush1.msra.mxu0 %v25
    %62 = vmatprep.subr.mxu0 0.0
    %63 = vmatpush1.msra.mxu0 %v24
    %64 = vmatprep.subr.mxu0 0.0
    %65 = vmatpush1.msra.mxu0 %v23
    %66 = vmatprep.subr.mxu0 0.0
    %67 = vmatpush1.msra.mxu0 %v22
    %68 = vmatprep.subr.mxu0 0.0
    %69 = vmatpush1.msra.mxu0 %v21
    %70 = vmatprep.subr.mxu0 0.0
    %71 = vmatpush2.msra.mxu0 0.0
    %72 = vmatprep.subr.mxu0 0.0
    %73 = vmatpush2.msra.mxu0 0.0
    %74 = vmatprep.subr.mxu0 0.0
    %75 = vmatpush2.msra.mxu0 0.0
    %76 = vmatprep.subr.mxu0 0.0
    %77 = vmatpush2.msra.mxu0 0.0
    %78 = vmatprep.subr.mxu0 0.0
    %79 = vmatpush2.msra.mxu0 0.0
    %80 = vmatprep.subr.mxu0 0.0
    %81 = vmatpush2.msra.mxu0 0.0
    %82 = vmatprep.subr.mxu0 0.0
    %83 = vmatpush2.msra.mxu0 0.0
    %84 = vmatprep.subr.mxu0 0.0
    %85 = vmatpush2.msra.mxu0 0.0
    %86 = vmatprep.subr.mxu0 0.0
    %87 = vmatpush2.msra.mxu0 0.0
    %88 = vmatprep.subr.mxu0 0.0
    %89 = vmatpush2.msra.mxu0 0.0
    %90 = vmatprep.subr.mxu0 0.0
    %91 = vmatpush2.msra.mxu0 0.0
    %92 = vmatprep.subr.mxu0 0.0
    %93 = vmatpush2.msra.mxu0 0.0
    %94 = vmatprep.subr.mxu0 0.0
    %95 = vmatpush2.msra.mxu0 0.0
    %96 = vmatprep.subr.mxu0 0.0
    %97 = vmatpush2.msra.mxu0 0.0
    %98 = vmatprep.subr.mxu0 0.0
    %99 = vmatpush2.msra.mxu0 0.0
    %100 = vmatprep.subr.mxu0 0.0
    %101 = vmatpush2.msra.mxu0 0.0
    %102 = vmatprep.mubr.f32.mxu0 0.0
    %103 = vmatmul.mubr.f32.gmra.mxu0 %v20
    %v104 = vpop.f32.mrf.mxu0
    %v105 = vadd.f32 0.0, %v104
    %v106 = vpop.f32.mrf.mxu0
    %107 = vdwg.mxu0
    %v108 = vadd.f32 %v37, %v105
    %109 = vst [vmem:[#allocation2] sm:$0xff] %v108
    %v110 = vld [vmem:[#allocation3] sm:$0xff]
    %v111 = vmul.f32 %v20, %v20
    %112 = vadd.xlane.f32.xlu0 %v111
    %v113 = vpop.xlane.xlu0 %112
    %v114 = vadd.f32 %v110, %v113
    %vm115 = vcmask 7168
    %116 = vst.msk [vmem:[#allocation3] sm:$0xff] %vm115, %v114
    %v117 = vld [vmem:[#allocation4] sm:$0x1]
    %v118 = vmul.f32 %v21, %v21
    %v119 = vmul.f32 %v22, %v22
    %v120 = vmul.f32 %v23, %v23
    %v121 = vmul.f32 %v24, %v24
    %v122 = vmul.f32 %v25, %v25
    %v123 = vmul.f32 %v26, %v26
    %v124 = vmul.f32 %v27, %v27
    %v125 = vmul.f32 %v28, %v28
    %v126 = vmul.f32 %v29, %v29
    %v127 = vmul.f32 %v30, %v30
    %v128 = vmul.f32 %v31, %v31
    %v129 = vmul.f32 %v32, %v32
    %v130 = vmul.f32 %v33, %v33
    %v131 = vmul.f32 %v34, %v34
    %v132 = vmul.f32 %v35, %v35
    %v133 = vmul.f32 %v36, %v36
    %v134 = vadd.f32 %v118, %v119
    %v135 = vadd.f32 %v134, %v120
    %v136 = vadd.f32 %v135, %v121
    %v137 = vadd.f32 %v136, %v122
    %v138 = vadd.f32 %v137, %v123
    %v139 = vadd.f32 %v138, %v124
    %v140 = vadd.f32 %v139, %v125
    %v141 = vadd.f32 %v140, %v126
    %v142 = vadd.f32 %v141, %v127
    %v143 = vadd.f32 %v142, %v128
    %v144 = vadd.f32 %v143, %v129
    %v145 = vadd.f32 %v144, %v130
    %v146 = vadd.f32 %v145, %v131
    %v147 = vadd.f32 %v146, %v132
    %v148 = vadd.f32 %v147, %v133
    %v149 = vrot.slane %v148, 4
    %v150 = vadd.f32 %v148, %v149
    %v151 = vrot.slane %v150, 2
    %v152 = vadd.f32 %v150, %v151
    %v153 = vrot.slane %v152, 1
    %v154 = vadd.f32 %v152, %v153
    %v155 = vadd.f32 %v117, %v154
    %156 = vst [vmem:[#allocation4] sm:$0x1] %v155
    // Predicated region
    $region14: #{normed_linear.1} parent=1 // pred_check
      %p157 = pneg %p12
    $region15: #{normed_linear.1} parent=1 // pred_check_branch
      %159 = sbr.rel (%p157) target = $region17
    $region16: #{normed_linear.1} parent=1 // pred_region
      %v160 = vld [vmem:[#allocation3] sm:$0xff]
      %v161 = vmax.f32 %v160, 1e-24
      %v162 = vrsqrt.pop %v161
      %v163 = vld [vmem:[#allocation4] sm:$0x1]
      %v164 = vmax.f32 %v163, 1e-24
      %v165 = vrsqrt.pop %v164
      %v166 = vld [vmem:[#allocation2] sm:$0xff]
      %168 = vset.pattern.permute.xlu0 0
      %169 = vperm.xlu0 %168, %v162
      %v170 = vpop.permute.xlu0 %169
      %v172 = vmul.f32 %v166, %v170
      %v174 = vlaneseq
      %v175 = vshrl.u32 %v174, 7
      %v176 = vsub.s32 0, %v175
      %v177 = vrot.slane %v165, %v176
      %v179 = vmul.f32 %v172, %v177
      %180 = vst [vmem:[#allocation5] sm:$0xff] %v179
    $region17: #{normed_linear.1} parent=1 // pred_fallthru
      _
    // Predicated region
    $region18: #{normed_linear.1} parent=1 // pred_check
      _
    $region19: #{normed_linear.1} parent=1 // pred_check_branch
      %182 = sbr.rel (0) target = $region21
    $region20: #{normed_linear.1} parent=1 // pred_region
      %s184 = ssub.s32 128, 128
      %185 = vsyncadd [#allocation6], %s184
      %s187 = sshll.u32 [#allocation5], 4
      %s188 = int_to_ptr.vmem [resolvable:$true] %s187
      %190 = dma.vmem_to_hbm [thread:$0]  %s188, 128, %s2, [#allocation6]
    $region21: #{normed_linear.1} parent=1 // pred_fallthru
      _
    // Predicated region
    $region22: #{normed_linear.1} parent=1 // pred_check
      _
    $region23: #{normed_linear.1} parent=1 // pred_check_branch
      %192 = sbr.rel (0) target = $region25
    $region24: #{normed_linear.1} parent=1 // pred_region
      %193 = dma.done [#allocation6], 128
    $region25: #{normed_linear.1} parent=1 // pred_fallthru
      _
    %194 = vsyncpa [#allocation6], 1

</llo_original>
